<compile_context>
chip_gen: v7x
topology: tpu7x:2x2x1
jax: 0.10.0
libtpu: 0.0.40
codegen_flags: <defaults>
</compile_context>

<pallas_src>
import jax
import jax.numpy as jnp
from jax.experimental import pallas as pl
from jax.experimental.pallas import tpu as pltpu


def _round_up(v, m):
    return (v + m - 1) // m * m


def _vmem_capacity_bytes():
    try:
        return int(pltpu.get_tpu_info().vmem_capacity_bytes)
    except Exception:
        return 64 * 1024 * 1024


def _tile_sizes(num_nodes, num_edges):
    """Generation-aware tile / padding / VMEM-budget selection."""
    cap = _vmem_capacity_bytes()
    vmem_limit = int(cap * 0.72)
    big_vmem = cap >= 96 * 1024 * 1024            # v5e/v6e (128 MiB) vs v7x (64 MiB)
    stream_budget = (24 if big_vmem else 8) * 1024 * 1024
    tn_cap = 2048 if big_vmem else 512

    m_pad = _round_up(max(num_edges, 1), 128)

    # TN: multiple of 128 (lane dim of the H^T tiles), bounded so the
    # double-buffered (TN, m_pad) bf16 incidence stream fits the budget.
    tn = (stream_budget // (2 * 2 * m_pad)) // 128 * 128
    tn = max(128, min(tn_cap, tn))
    n_aligned = _round_up(max(num_nodes, 1), 128)
    tn = min(tn, n_aligned)
    n_pad = _round_up(max(num_nodes, 1), tn)

    # TM: multiple-of-128 divisor of m_pad, <= 512, preferring >= 2 tiles so the
    # phase-1 "parallel" axis can shard across TensorCores.
    if m_pad <= 128:
        tm = m_pad
    else:
        tm = 128
        cand = (min(512, m_pad // 2) // 128) * 128
        while cand >= 128:
            if m_pad % cand == 0:
                tm = cand
                break
            cand -= 128
    return tn, n_pad, tm, m_pad, vmem_limit


# ---------------------------------------------------------------------------
# Phase 0 (per layer): Xt = x @ Wn + bn  (bf16 out; tiny, hoisted out of the
# phase-1 reduction so Wn/bn never sit in the hot loop).
# ---------------------------------------------------------------------------
def _xt_kernel(x_ref, wn_ref, bn_ref, xt_ref):
    xt = (jnp.dot(x_ref[...], wn_ref[...], preferred_element_type=jnp.float32)
          + bn_ref[...])
    xt_ref[...] = xt.astype(xt_ref.dtype)


def _node_transform(x, wn, bn, tn, vmem_limit):
    n_pad, din_p = x.shape
    f_pad = wn.shape[1]
    grid = (n_pad // tn,)
    flops = 2 * n_pad * din_p * f_pad
    bytes_acc = 2 * (n_pad * din_p + n_pad * f_pad + din_p * f_pad)
    return pl.pallas_call(
        _xt_kernel,
        out_shape=jax.ShapeDtypeStruct((n_pad, f_pad), jnp.bfloat16),
        grid_spec=pltpu.PrefetchScalarGridSpec(
            num_scalar_prefetch=0,
            grid=grid,
            in_specs=[
                pl.BlockSpec((tn, din_p), lambda i: (i, 0)),            # x tile
                pl.BlockSpec((din_p, f_pad), lambda i: (0, 0),
                             pipeline_mode=pl.Buffered(1)),             # Wn (resident)
                pl.BlockSpec((1, f_pad), lambda i: (0, 0),
                             pipeline_mode=pl.Buffered(1)),             # bn (resident)
            ],
            out_specs=pl.BlockSpec((tn, f_pad), lambda i: (i, 0)),
        ),
        compiler_params=pltpu.CompilerParams(
            dimension_semantics=("parallel",),
            vmem_limit_bytes=vmem_limit,
        ),
        cost_estimate=pl.CostEstimate(
            flops=int(flops), transcendentals=0, bytes_accessed=int(bytes_acc)),
    )(x, wn, bn)


# ---------------------------------------------------------------------------
# Phase 1: m_e = B^{-1} (H^T Xt) + (e @ We + be)
#   grid = (M tiles "parallel", N tiles "arbitrary" reduction).
#   f32 accumulator (TM, F) resident in VMEM; B^{-1} applied in f32 at finalize.
# ---------------------------------------------------------------------------
def _edge_agg_kernel(ht_ref, xt_ref, e_ref, we_ref, be_ref, binv_ref,
                     me_ref, acc_ref):
    ni = pl.program_id(1)

    @pl.when(ni == 0)
    def _init():
        acc_ref[...] = jnp.zeros_like(acc_ref)

    acc_ref[...] += jnp.dot(ht_ref[...], xt_ref[...],
                            preferred_element_type=jnp.float32)

    @pl.when(ni == pl.num_programs(1) - 1)
    def _finalize():
        # Edge transform done once per M tile (small matmul) + f32 mean scale.
        # NOTE: padded hyperedge rows end up holding `be`; harmless because the
        # padded columns of H are zero in phase 2.
        e_t = (jnp.dot(e_ref[...], we_ref[...],
                       preferred_element_type=jnp.float32) + be_ref[...])
        me_ref[...] = (binv_ref[...] * acc_ref[...] + e_t).astype(me_ref.dtype)


def _edge_aggregate(ht, xt, e, we, be, binv, tm, tn, vmem_limit):
    m_pad, n_pad = ht.shape
    f_pad = xt.shape[1]
    edim_p = e.shape[1]
    grid = (m_pad // tm, n_pad // tn)
    flops = 2 * m_pad * n_pad * f_pad + 2 * m_pad * edim_p * f_pad
    bytes_acc = 2 * (m_pad * n_pad + (m_pad // tm) * n_pad * f_pad
                     + m_pad * f_pad + m_pad * edim_p + edim_p * f_pad)
    return pl.pallas_call(
        _edge_agg_kernel,
        out_shape=jax.ShapeDtypeStruct((m_pad, f_pad), jnp.bfloat16),
        grid_spec=pltpu.PrefetchScalarGridSpec(
            num_scalar_prefetch=0,
            grid=grid,
            in_specs=[
                pl.BlockSpec((tm, tn), lambda mi, ni: (mi, ni)),        # H^T tile
                pl.BlockSpec((tn, f_pad), lambda mi, ni: (ni, 0)),      # Xt tile
                pl.BlockSpec((tm, edim_p), lambda mi, ni: (mi, 0)),     # e tile
                pl.BlockSpec((edim_p, f_pad), lambda mi, ni: (0, 0),
                             pipeline_mode=pl.Buffered(1)),             # We
                pl.BlockSpec((1, f_pad), lambda mi, ni: (0, 0),
                             pipeline_mode=pl.Buffered(1)),             # be
                pl.BlockSpec((tm, 1), lambda mi, ni: (mi, 0)),          # B^{-1} (f32)
            ],
            out_specs=pl.BlockSpec((tm, f_pad), lambda mi, ni: (mi, 0)),
            scratch_shapes=[pltpu.VMEM((tm, f_pad), jnp.float32)],
        ),
        compiler_params=pltpu.CompilerParams(
            dimension_semantics=("parallel", "arbitrary"),
            vmem_limit_bytes=vmem_limit,
        ),
        cost_estimate=pl.CostEstimate(
            flops=int(flops), transcendentals=0, bytes_accessed=int(bytes_acc)),
    )(ht, xt, e, we, be, binv)


# ---------------------------------------------------------------------------
# Phase 2: out = PReLU(D^{-1} (H m_e))
#   grid over N tiles ("parallel" -> megacore); m_e single-buffered resident;
#   D^{-1} applied in f32; bf16 output for non-final layers.
# ---------------------------------------------------------------------------
def _node_agg_kernel(alpha_ref, h_ref, me_ref, dinv_ref, out_ref):
    agg = jnp.dot(h_ref[...], me_ref[...], preferred_element_type=jnp.float32)
    agg = dinv_ref[...] * agg
    a = alpha_ref[0]
    out_ref[...] = jnp.where(agg > 0, agg, a * agg).astype(out_ref.dtype)


def _node_aggregate(alpha, h, me, dinv, tn, out_dtype, vmem_limit):
    n_pad, m_pad = h.shape
    f_pad = me.shape[1]
    grid = (n_pad // tn,)
    out_bytes = n_pad * f_pad * jnp.dtype(out_dtype).itemsize
    flops = 2 * n_pad * m_pad * f_pad
    bytes_acc = 2 * (n_pad * m_pad + m_pad * f_pad) + out_bytes
    return pl.pallas_call(
        _node_agg_kernel,
        out_shape=jax.ShapeDtypeStruct((n_pad, f_pad), out_dtype),
        grid_spec=pltpu.PrefetchScalarGridSpec(
            num_scalar_prefetch=0,
            grid=grid,
            in_specs=[
                pl.BlockSpec(memory_space=pltpu.MemorySpace.SMEM),      # alpha scalar
                pl.BlockSpec((tn, m_pad), lambda i: (i, 0)),            # H tile
                pl.BlockSpec((m_pad, f_pad), lambda i: (0, 0),
                             pipeline_mode=pl.Buffered(1)),             # m_e (resident)
                pl.BlockSpec((tn, 1), lambda i: (i, 0)),                # D^{-1} (f32)
            ],
            out_specs=pl.BlockSpec((tn, f_pad), lambda i: (i, 0)),
        ),
        compiler_params=pltpu.CompilerParams(
            dimension_semantics=("parallel",),
            vmem_limit_bytes=vmem_limit,
        ),
        cost_estimate=pl.CostEstimate(
            flops=int(flops), transcendentals=0, bytes_accessed=int(bytes_acc)),
    )(alpha, h, me, dinv)


class HyperDecoderPallas:
    """JAX/Pallas port of HyperDecoder(in_dim, edge_dim, out_dim, num_layers)."""

    def __init__(self, in_dim, edge_dim, out_dim, num_layers=2, key=None):
        self.in_dim, self.edge_dim, self.out_dim = in_dim, edge_dim, out_dim
        self.num_layers = num_layers
        # feature dims padded to the 128-lane width (lane-dense, full MXU)
        self.in_dim_p = _round_up(in_dim, 128)
        self.edge_dim_p = _round_up(edge_dim, 128)
        self.out_dim_p = _round_up(out_dim, 128)
        if key is None:
            key = jax.random.PRNGKey(42)

        self.params = []
        d_ins = [in_dim] + [out_dim] * (num_layers - 1)
        d_ins_p = [self.in_dim_p] + [self.out_dim_p] * (num_layers - 1)
        for li in range(num_layers):
            k1, k2, k3, k4, key = jax.random.split(key, 5)
            d_in, d_in_p = d_ins[li], d_ins_p[li]
            sn = 1.0 / float(d_in) ** 0.5
            se = 1.0 / float(edge_dim) ** 0.5
            # nn.Linear-style uniform init for weights AND biases.
            # TODO(synk): ProposedDeconv init unknown; nn.Linear defaults assumed.
            wn = jnp.zeros((d_in_p, self.out_dim_p), jnp.float32)
            wn = wn.at[:d_in, :out_dim].set(
                jax.random.uniform(k1, (d_in, out_dim), jnp.float32, -sn, sn))
            we = jnp.zeros((self.edge_dim_p, self.out_dim_p), jnp.float32)
            we = we.at[:edge_dim, :out_dim].set(
                jax.random.uniform(k2, (edge_dim, out_dim), jnp.float32, -se, se))
            bn = jnp.zeros((1, self.out_dim_p), jnp.float32)
            bn = bn.at[0, :out_dim].set(
                jax.random.uniform(k3, (out_dim,), jnp.float32, -sn, sn))
            be = jnp.zeros((1, self.out_dim_p), jnp.float32)
            be = be.at[0, :out_dim].set(
                jax.random.uniform(k4, (out_dim,), jnp.float32, -se, se))
            self.params.append((wn.astype(jnp.bfloat16), bn,
                                we.astype(jnp.bfloat16), be))
        # nn.PReLU() default: ONE shared parameter (init 0.25), same module
        # instance reused for every layer in the reference forward.
        self.alpha = jnp.full((1,), 0.25, jnp.float32)

    def __call__(self, x, e, hyperedge_index, num_nodes, num_edges):
        tn, n_pad, tm, m_pad, vmem_limit = _tile_sizes(num_nodes, num_edges)

        # --- glue (plain JAX, outside the hot kernels): dense bf16 incidence
        #     built once, degrees reduced in f32, H^T materialized once and
        #     reused by every layer.  Degree scales stay f32 (applied in-kernel).
        # TODO(synk): for very sparse hypergraphs a scalar-prefetch gather kernel
        #             over hyperedge_index would beat this dense formulation.
        node_idx = hyperedge_index[0]
        edge_idx = hyperedge_index[1]
        h = jnp.zeros((n_pad, m_pad), jnp.bfloat16)
        h = h.at[node_idx, edge_idx].set(1.0)
        deg_n = jnp.sum(h, axis=1, dtype=jnp.float32).reshape(n_pad, 1)
        deg_e = jnp.sum(h, axis=0, dtype=jnp.float32).reshape(m_pad, 1)
        dinv = 1.0 / jnp.maximum(deg_n, 1.0)          # (N_p, 1) f32
        binv = 1.0 / jnp.maximum(deg_e, 1.0)          # (M_p, 1) f32
        ht = h.T                                      # (M_p, N_p) bf16, built once

        e_p = jnp.zeros((m_pad, self.edge_dim_p), jnp.bfloat16)
        e_p = e_p.at[:num_edges, :self.edge_dim].set(e.astype(jnp.bfloat16))
        x_p = jnp.zeros((n_pad, self.in_dim_p), jnp.bfloat16)
        x_p = x_p.at[:num_nodes, :self.in_dim].set(x.astype(jnp.bfloat16))

        # --- hot path: three fused Pallas kernels per layer ---
        xc = x_p
        out = None
        for li, (wn, bn, we, be) in enumerate(self.params):
            xt = _node_transform(xc, wn, bn, tn, vmem_limit)            # (N_p,F_p) bf16
            me = _edge_aggregate(ht, xt, e_p, we, be, binv,
                                 tm, tn, vmem_limit)                    # (M_p,F_p) bf16
            last = (li == self.num_layers - 1)
            out_dtype = jnp.float32 if last else jnp.bfloat16
            out = _node_aggregate(self.alpha, h, me, dinv, tn,
                                  out_dtype, vmem_limit)                # (N_p,F_p)
            xc = out                                                    # bf16 for non-final layers
        return out[:num_nodes, :self.out_dim]


if __name__ == "__main__":
    # Small deterministic example consistent with the module's forward signature.
    num_nodes = 16
    num_edges = 8
    in_dim = 32
    edge_dim = 16
    out_dim = 32
    num_layers = 2
    nnz = 24

    key = jax.random.PRNGKey(0)
    kx, ke, kn, km = jax.random.split(key, 4)
    x = jax.random.normal(kx, (num_nodes, in_dim), jnp.float32)
    e = jax.random.normal(ke, (num_edges, edge_dim), jnp.float32)
    hyperedge_index = jnp.stack([
        jax.random.randint(kn, (nnz,), 0, num_nodes),
        jax.random.randint(km, (nnz,), 0, num_edges),
    ], axis=0).astype(jnp.int32)

    model = HyperDecoderPallas(in_dim, edge_dim, out_dim, num_layers=num_layers)
    out = model(x, e, hyperedge_index, num_nodes, num_edges)
    out = jax.block_until_ready(out)
    assert out.shape == (num_nodes, out_dim)
    assert bool(jnp.all(jnp.isfinite(out)))
    print("KERNEL_OK")
</pallas_src>

<mosaic_0001>
module attributes {stable_mosaic.version = 11 : i64} {
  func.func @_xt_kernel(%arg0: i32, %arg1: memref<128x128xbf16, #tpu.memory_space<vmem>>, %arg2: memref<128x128xbf16, #tpu.memory_space<vmem>>, %arg3: memref<1x128xf32, #tpu.memory_space<vmem>>, %arg4: memref<128x128xbf16, #tpu.memory_space<vmem>>) attributes {dimension_semantics = [#tpu.dimension_semantics<parallel>], iteration_bounds = array<i64: 1>, scalar_prefetch = 0 : i64, scratch_operands = 0 : i64, tpu.core_type = #tpu.core_type<tc>, window_params = [{transform_indices = @transform_0, window_bounds = array<i64: 128, 128>}, {pipeline_mode = #tpu.pipeline_mode<synchronous>, transform_indices = @transform_1, window_bounds = array<i64: 128, 128>}, {pipeline_mode = #tpu.pipeline_mode<synchronous>, transform_indices = @transform_2, window_bounds = array<i64: 1, 128>}, {transform_indices = @transform_3, window_bounds = array<i64: 128, 128>}]} {
    %c0 = arith.constant 0 : index
    %c0_0 = arith.constant 0 : index
    %0 = vector.load %arg1[%c0, %c0_0] : memref<128x128xbf16, #tpu.memory_space<vmem>>, vector<128x128xbf16>
    %c0_1 = arith.constant 0 : index
    %c0_2 = arith.constant 0 : index
    %1 = vector.load %arg2[%c0_1, %c0_2] : memref<128x128xbf16, #tpu.memory_space<vmem>>, vector<128x128xbf16>
    %cst = arith.constant dense<0.000000e+00> : vector<128x128xf32>
    %2 = tpu.matmul %0, %1, %cst {dimension_numbers = #tpu.dot_dimension_numbers<[1], [0], [0], [1], [0, 0, 1, 1], [], []>} : vector<128x128xbf16>, vector<128x128xbf16>, vector<128x128xf32> -> vector<128x128xf32>
    %c0_3 = arith.constant 0 : index
    %c0_4 = arith.constant 0 : index
    %3 = vector.load %arg3[%c0_3, %c0_4] : memref<1x128xf32, #tpu.memory_space<vmem>>, vector<1x128xf32>
    %4 = vector.broadcast %3 : vector<1x128xf32> to vector<128x128xf32>
    %5 = arith.addf %2, %4 : vector<128x128xf32>
    %6 = arith.truncf %5 : vector<128x128xf32> to vector<128x128xbf16>
    %c0_5 = arith.constant 0 : index
    %c0_6 = arith.constant 0 : index
    %7 = vector.load %arg4[%c0_5, %c0_6] : memref<128x128xbf16, #tpu.memory_space<vmem>>, vector<128x128xbf16>
    tpu.vector_store %arg4[%c0_5, %c0_6], %6 {strides = array<i32>} : memref<128x128xbf16, #tpu.memory_space<vmem>>, vector<128x128xbf16>,
    return
  }
  func.func @transform_0(%arg0: i32) -> (i32, i32) {
    %c0_i32 = arith.constant 0 : i32
    %c0_i32_0 = arith.constant 0 : i32
    return %arg0, %c0_i32 : i32, i32
  }
  func.func @transform_1(%arg0: i32) -> (i32, i32) {
    %c0_i32 = arith.constant 0 : i32
    %c0_i32_0 = arith.constant 0 : i32
    %c0_i32_1 = arith.constant 0 : i32
    return %c0_i32, %c0_i32_0 : i32, i32
  }
  func.func @transform_2(%arg0: i32) -> (i32, i32) {
    %c0_i32 = arith.constant 0 : i32
    %c0_i32_0 = arith.constant 0 : i32
    %c0_i32_1 = arith.constant 0 : i32
    return %c0_i32, %c0_i32_0 : i32, i32
  }
  func.func @transform_3(%arg0: i32) -> (i32, i32) {
    %c0_i32 = arith.constant 0 : i32
    %c0_i32_0 = arith.constant 0 : i32
    return %arg0, %c0_i32 : i32, i32
  }
}

</mosaic_0001>

<llo_original>
// kernel: tpu_custom_call.1
$region0: #{tpu_custom_call.1}
  #allocation0 [shape = 'u32[]', space=smem, size = 0x4, offset = 0x4, fixed_abs, tag = 'smem constant byte address 0x4 - core index']
  #allocation1 [shape = 'u32[144,128]{1,0:T(1,128)}', space=vmem, size = 0x12000, scoped, tag = 'internal scratch']
  %s0 = inlined_call_operand.hbm [shape: bf16[128,128], index: 0, kind: input, shape index: {}]
  %s1 = inlined_call_operand.hbm [shape: bf16[128,128], index: 1, kind: input, shape index: {}]
  %s2 = inlined_call_operand.vmem [shape: f32[1,128], index: 2, kind: input, shape index: {}]
  %s3 = inlined_call_operand.hbm [shape: bf16[128,128], index: 3, kind: output, shape index: {}]
  %s4 = sld [smem:[#allocation0]]
  $region30: #{tpu_custom_call.1} parent=0
    _
  %s6 = ssub.s32 1, %s4
  %s7 = scalar_select 0, %s6, %s4
  $region1: #{tpu_custom_call.1} parent=0
    #allocation2 [shape = 'u8[32768]{0}', space=vmem, size = 0x8000, scoped, tag = 'input window, operand 0, single buffered']
    #allocation3 [shape = 's32[1]{0}', space=sflag, size = 0x4, scoped, tag = 'scoped memory for tpu_custom_call.1']
    #allocation4 [shape = 's32[1]{0}', space=sflag, size = 0x4, scoped, tag = 'scoped memory for tpu_custom_call.1']
    #allocation5 [shape = 'u8[32768]{0}', space=vmem, size = 0x8000, scoped, tag = 'input window, operand 1, single buffered']
    #allocation6 [shape = 's32[1]{0}', space=sflag, size = 0x4, scoped, tag = 'scoped memory for tpu_custom_call.1']
    #allocation7 [shape = 'u8[32768]{0}', space=vmem, size = 0x8000, scoped, tag = 'output window, operand 0, single buffered']
    %8 = vsyncpa [#allocation3], 0
    %9 = vsyncpa [#allocation6], 0
    %10 = vsyncpa [#allocation4], 0
    // Predicated region
    $region2: #{tpu_custom_call.1} parent=1 // pred_check
      _
    $region3: #{tpu_custom_call.1} parent=1 // pred_check_branch
      %12 = sbr.rel (0) target = $region5
    $region4: #{tpu_custom_call.1} parent=1 // pred_region
      %s14 = ssub.s32 1024, 1024
      %15 = vsyncadd [#allocation3], %s14
      %s16 = sshll.u32 [#allocation2], 4
      %s17 = int_to_ptr.vmem [resolvable:$true] %s16
      %22 = dma.hbm_to_vmem [thread:$0]  %s0, 1024, %s17, [#allocation3], 64, 64, 4
    $region5: #{tpu_custom_call.1} parent=1 // pred_fallthru
      _
    // Predicated region
    $region6: #{tpu_custom_call.1} parent=1 // pred_check
      _
    $region7: #{tpu_custom_call.1} parent=1 // pred_check_branch
      %24 = sbr.rel (0) target = $region9
    $region8: #{tpu_custom_call.1} parent=1 // pred_region
      %s26 = ssub.s32 1024, 1024
      %27 = vsyncadd [#allocation6], %s26
      %s28 = sshll.u32 [#allocation5], 4
      %s29 = int_to_ptr.vmem [resolvable:$true] %s28
      %34 = dma.hbm_to_vmem [thread:$0]  %s1, 1024, %s29, [#allocation6], 64, 64, 4
    $region9: #{tpu_custom_call.1} parent=1 // pred_fallthru
      _
    // Predicated region
    $region10: #{tpu_custom_call.1} parent=1 // pred_check
      _
    $region11: #{tpu_custom_call.1} parent=1 // pred_check_branch
      %36 = sbr.rel (0) target = $region13
    $region12: #{tpu_custom_call.1} parent=1 // pred_region
      _
    $region13: #{tpu_custom_call.1} parent=1 // pred_fallthru
      _
    // Predicated region
    $region14: #{tpu_custom_call.1} parent=1 // pred_check
      _
    $region15: #{tpu_custom_call.1} parent=1 // pred_check_branch
      %38 = sbr.rel (0) target = $region17
    $region16: #{tpu_custom_call.1} parent=1 // pred_region
      %39 = dma.done [#allocation3], 1024
    $region17: #{tpu_custom_call.1} parent=1 // pred_fallthru
      _
    // Predicated region
    $region18: #{tpu_custom_call.1} parent=1 // pred_check
      _
    $region19: #{tpu_custom_call.1} parent=1 // pred_check_branch
      %41 = sbr.rel (0) target = $region21
    $region20: #{tpu_custom_call.1} parent=1 // pred_region
      %42 = dma.done [#allocation6], 1024
    $region21: #{tpu_custom_call.1} parent=1 // pred_fallthru
      _
    %v44 = vld [vmem:[#allocation2] sm:$0xf]
    %v45 = vld [vmem:[#allocation2 + $0x4] sm:$0xf]
    %v46 = vld [vmem:[#allocation2 + $0x8] sm:$0xf]
    %v47 = vld [vmem:[#allocation2 + $0xc] sm:$0xf]
    %v48 = vld [vmem:[#allocation2 + $0x10] sm:$0xf]
    %v49 = vld [vmem:[#allocation2 + $0x14] sm:$0xf]
    %v50 = vld [vmem:[#allocation2 + $0x18] sm:$0xf]
    %v51 = vld [vmem:[#allocation2 + $0x1c] sm:$0xf]
    %v52 = vld [vmem:[#allocation2 + $0x20] sm:$0xf]
    %v53 = vld [vmem:[#allocation2 + $0x24] sm:$0xf]
    %v54 = vld [vmem:[#allocation2 + $0x28] sm:$0xf]
    %v55 = vld [vmem:[#allocation2 + $0x2c] sm:$0xf]
    %v56 = vld [vmem:[#allocation2 + $0x30] sm:$0xf]
    %v57 = vld [vmem:[#allocation2 + $0x34] sm:$0xf]
    %v58 = vld [vmem:[#allocation2 + $0x38] sm:$0xf]
    %v59 = vld [vmem:[#allocation2 + $0x3c] sm:$0xf]
    %v60 = vld [vmem:[#allocation5] sm:$0xf]
    %v61 = vld [vmem:[#allocation5 + $0x4] sm:$0xf]
    %v62 = vld [vmem:[#allocation5 + $0x8] sm:$0xf]
    %v63 = vld [vmem:[#allocation5 + $0xc] sm:$0xf]
    %v64 = vld [vmem:[#allocation5 + $0x10] sm:$0xf]
    %v65 = vld [vmem:[#allocation5 + $0x14] sm:$0xf]
    %v66 = vld [vmem:[#allocation5 + $0x18] sm:$0xf]
    %v67 = vld [vmem:[#allocation5 + $0x1c] sm:$0xf]
    %v68 = vld [vmem:[#allocation5 + $0x20] sm:$0xf]
    %v69 = vld [vmem:[#allocation5 + $0x24] sm:$0xf]
    %v70 = vld [vmem:[#allocation5 + $0x28] sm:$0xf]
    %v71 = vld [vmem:[#allocation5 + $0x2c] sm:$0xf]
    %v72 = vld [vmem:[#allocation5 + $0x30] sm:$0xf]
    %v73 = vld [vmem:[#allocation5 + $0x34] sm:$0xf]
    %v74 = vld [vmem:[#allocation5 + $0x38] sm:$0xf]
    %v75 = vld [vmem:[#allocation5 + $0x3c] sm:$0xf]
    %v76 = vld [vmem:[%s2] sm:$0x1]
    %v78 = vlaneseq
    %v79 = vshrl.u32 %v78, 7
    %v80 = vsub.s32 0, %v79
    %v81 = vrot.slane %v76, %v80
    %v99 = vunpack.c.l.b16 %v44
    %v100 = vunpack.c.l.b16 %v45
    %v101 = vunpack.c.l.b16 %v46
    %v102 = vunpack.c.l.b16 %v47
    %v103 = vunpack.c.l.b16 %v48
    %v104 = vunpack.c.l.b16 %v49
    %v105 = vunpack.c.l.b16 %v50
    %v106 = vunpack.c.l.b16 %v51
    %v107 = vunpack.c.l.b16 %v52
    %v108 = vunpack.c.l.b16 %v53
    %v109 = vunpack.c.l.b16 %v54
    %v110 = vunpack.c.l.b16 %v55
    %v111 = vunpack.c.l.b16 %v56
    %v112 = vunpack.c.l.b16 %v57
    %v113 = vunpack.c.l.b16 %v58
    %v114 = vunpack.c.l.b16 %v59
    %v115 = vpack.c.b16 %v100, %v99
    %v116 = vpack.c.b16 %v102, %v101
    %v117 = vpack.c.b16 %v104, %v103
    %v118 = vpack.c.b16 %v106, %v105
    %v119 = vpack.c.b16 %v108, %v107
    %v120 = vpack.c.b16 %v110, %v109
    %v121 = vpack.c.b16 %v112, %v111
    %v122 = vpack.c.b16 %v114, %v113
    %v147 = vunpack.c.l.b16 %v60
    %v148 = vunpack.c.l.b16 %v61
    %v149 = vunpack.c.l.b16 %v62
    %v150 = vunpack.c.l.b16 %v63
    %v151 = vunpack.c.l.b16 %v64
    %v152 = vunpack.c.l.b16 %v65
    %v153 = vunpack.c.l.b16 %v66
    %v154 = vunpack.c.l.b16 %v67
    %v155 = vunpack.c.l.b16 %v68
    %v156 = vunpack.c.l.b16 %v69
    %v157 = vunpack.c.l.b16 %v70
    %v158 = vunpack.c.l.b16 %v71
    %v159 = vunpack.c.l.b16 %v72
    %v160 = vunpack.c.l.b16 %v73
    %v161 = vunpack.c.l.b16 %v74
    %v162 = vunpack.c.l.b16 %v75
    %v163 = vpack.c.b16 %v148, %v147
    %v164 = vpack.c.b16 %v150, %v149
    %v165 = vpack.c.b16 %v152, %v151
    %v166 = vpack.c.b16 %v154, %v153
    %v167 = vpack.c.b16 %v156, %v155
    %v168 = vpack.c.b16 %v158, %v157
    %v169 = vpack.c.b16 %v160, %v159
    %v170 = vpack.c.b16 %v162, %v161
    %179 = vmatprep.subr.bf16.mxu0 0
    %180 = vmatpush1.bf16.msra.mxu0 %v163
    %181 = vmatprep.subr.bf16.mxu0 0
    %182 = vmatpush1.bf16.msra.mxu0 %v164
    %183 = vmatprep.subr.bf16.mxu0 0
    %184 = vmatpush1.bf16.msra.mxu0 %v165
    %185 = vmatprep.subr.bf16.mxu0 0
    %186 = vmatpush1.bf16.msra.mxu0 %v166
    %187 = vmatprep.subr.bf16.mxu0 0
    %188 = vmatpush1.bf16.msra.mxu0 %v167
    %189 = vmatprep.subr.bf16.mxu0 0
    %190 = vmatpush1.bf16.msra.mxu0 %v168
    %191 = vmatprep.subr.bf16.mxu0 0
    %192 = vmatpush1.bf16.msra.mxu0 %v169
    %193 = vmatprep.subr.bf16.mxu0 0
    %194 = vmatpush1.bf16.msra.mxu0 %v170
    %195 = vmatprep.subr.bf16.mxu0 0
    %196 = vmatpush1.bf16.msra.mxu0 0
    %197 = vmatprep.subr.bf16.mxu0 0
    %198 = vmatpush1.bf16.msra.mxu0 0
    %199 = vmatprep.subr.bf16.mxu0 0
    %200 = vmatpush1.bf16.msra.mxu0 0
    %201 = vmatprep.subr.bf16.mxu0 0
    %202 = vmatpush1.bf16.msra.mxu0 0
    %203 = vmatprep.subr.bf16.mxu0 0
    %204 = vmatpush1.bf16.msra.mxu0 0
    %205 = vmatprep.subr.bf16.mxu0 0
    %206 = vmatpush1.bf16.msra.mxu0 0
    %207 = vmatprep.subr.bf16.mxu0 0
    %208 = vmatpush1.bf16.msra.mxu0 0
    %209 = vmatprep.subr.bf16.mxu0 0
    %210 = vmatpush1.bf16.msra.mxu0 0
    %211 = vmatprep.mubr.bf16.mxu0 0
    %212 = vmatmul.mubr.bf16.gmra.mrb[0].mxu0 %v115
    %v213 = vpop.f32.mrb[0].mxu0
    %v214 = vadd.f32 %v81, %v213
    %v215 = vpop.f32.mrb[0].mxu0
    %v216 = vpop.f32.mrb[0].mxu0
    %v217 = vadd.f32 %v81, %v216
    %v218 = vpop.f32.mrb[0].mxu0
    %219 = vmatprep.mubr.bf16.mxu0 0
    %220 = vmatmul.mubr.bf16.gmra.mrb[0].mxu0 %v116
    %v221 = vpop.f32.mrb[0].mxu0
    %v222 = vadd.f32 %v81, %v221
    %v223 = vpop.f32.mrb[0].mxu0
    %v224 = vpop.f32.mrb[0].mxu0
    %v225 = vadd.f32 %v81, %v224
    %v226 = vpop.f32.mrb[0].mxu0
    %227 = vmatprep.mubr.bf16.mxu0 0
    %228 = vmatmul.mubr.bf16.gmra.mrb[0].mxu0 %v117
    %v229 = vpop.f32.mrb[0].mxu0
    %v230 = vadd.f32 %v81, %v229
    %v231 = vpop.f32.mrb[0].mxu0
    %v232 = vpop.f32.mrb[0].mxu0
    %v233 = vadd.f32 %v81, %v232
    %v234 = vpop.f32.mrb[0].mxu0
    %235 = vmatprep.mubr.bf16.mxu0 0
    %236 = vmatmul.mubr.bf16.gmra.mrb[0].mxu0 %v118
    %v237 = vpop.f32.mrb[0].mxu0
    %v238 = vadd.f32 %v81, %v237
    %v239 = vpop.f32.mrb[0].mxu0
    %v240 = vpop.f32.mrb[0].mxu0
    %v241 = vadd.f32 %v81, %v240
    %v242 = vpop.f32.mrb[0].mxu0
    %243 = vmatprep.mubr.bf16.mxu0 0
    %244 = vmatmul.mubr.bf16.gmra.mrb[0].mxu0 %v119
    %v245 = vpop.f32.mrb[0].mxu0
    %v246 = vadd.f32 %v81, %v245
    %v247 = vpop.f32.mrb[0].mxu0
    %v248 = vpop.f32.mrb[0].mxu0
    %v249 = vadd.f32 %v81, %v248
    %v250 = vpop.f32.mrb[0].mxu0
    %251 = vmatprep.mubr.bf16.mxu0 0
    %252 = vmatmul.mubr.bf16.gmra.mrb[0].mxu0 %v120
    %v253 = vpop.f32.mrb[0].mxu0
    %v254 = vadd.f32 %v81, %v253
    %v255 = vpop.f32.mrb[0].mxu0
    %v256 = vpop.f32.mrb[0].mxu0
    %v257 = vadd.f32 %v81, %v256
    %v258 = vpop.f32.mrb[0].mxu0
    %259 = vmatprep.mubr.bf16.mxu0 0
    %260 = vmatmul.mubr.bf16.gmra.mrb[0].mxu0 %v121
    %v261 = vpop.f32.mrb[0].mxu0
    %v262 = vadd.f32 %v81, %v261
    %v263 = vpop.f32.mrb[0].mxu0
    %v264 = vpop.f32.mrb[0].mxu0
    %v265 = vadd.f32 %v81, %v264
    %v266 = vpop.f32.mrb[0].mxu0
    %267 = vmatprep.mubr.bf16.mxu0 0
    %268 = vmatmul.mubr.bf16.gmra.mrb[0].mxu0 %v122
    %v269 = vpop.f32.mrb[0].mxu0
    %v270 = vadd.f32 %v81, %v269
    %v271 = vpop.f32.mrb[0].mxu0
    %v272 = vpop.f32.mrb[0].mxu0
    %v273 = vadd.f32 %v81, %v272
    %v274 = vpop.f32.mrb[0].mxu0
    %275 = vdwg.mxu0
    %v276 = vpack.c.bf16 %v217, %v214
    %v277 = vpack.c.bf16 %v225, %v222
    %v278 = vpack.c.bf16 %v233, %v230
    %v279 = vpack.c.bf16 %v241, %v238
    %v280 = vpack.c.bf16 %v249, %v246
    %v281 = vpack.c.bf16 %v257, %v254
    %v282 = vpack.c.bf16 %v265, %v262
    %v283 = vpack.c.bf16 %v273, %v270
    %v292 = vunpack.c.l.b16 %v276
    %v293 = vunpack.c.h.b16 %v276
    %v294 = vunpack.c.l.b16 %v277
    %v295 = vunpack.c.h.b16 %v277
    %v296 = vunpack.c.l.b16 %v278
    %v297 = vunpack.c.h.b16 %v278
    %v298 = vunpack.c.l.b16 %v279
    %v299 = vunpack.c.h.b16 %v279
    %v300 = vunpack.c.l.b16 %v280
    %v301 = vunpack.c.h.b16 %v280
    %v302 = vunpack.c.l.b16 %v281
    %v303 = vunpack.c.h.b16 %v281
    %v304 = vunpack.c.l.b16 %v282
    %v305 = vunpack.c.h.b16 %v282
    %v306 = vunpack.c.l.b16 %v283
    %v307 = vunpack.c.h.b16 %v283
    %v308 = vpack.c.b16 %v292, %v292
    %v309 = vpack.c.b16 %v293, %v293
    %v310 = vpack.c.b16 %v294, %v294
    %v311 = vpack.c.b16 %v295, %v295
    %v312 = vpack.c.b16 %v296, %v296
    %v313 = vpack.c.b16 %v297, %v297
    %v314 = vpack.c.b16 %v298, %v298
    %v315 = vpack.c.b16 %v299, %v299
    %v316 = vpack.c.b16 %v300, %v300
    %v317 = vpack.c.b16 %v301, %v301
    %v318 = vpack.c.b16 %v302, %v302
    %v319 = vpack.c.b16 %v303, %v303
    %v320 = vpack.c.b16 %v304, %v304
    %v321 = vpack.c.b16 %v305, %v305
    %v322 = vpack.c.b16 %v306, %v306
    %v323 = vpack.c.b16 %v307, %v307
    %340 = vst [vmem:[#allocation7] sm:$0xf] %v308
    %341 = vst [vmem:[#allocation7 + $0x4] sm:$0xf] %v309
    %342 = vst [vmem:[#allocation7 + $0x8] sm:$0xf] %v310
    %343 = vst [vmem:[#allocation7 + $0xc] sm:$0xf] %v311
    %344 = vst [vmem:[#allocation7 + $0x10] sm:$0xf] %v312
    %345 = vst [vmem:[#allocation7 + $0x14] sm:$0xf] %v313
    %346 = vst [vmem:[#allocation7 + $0x18] sm:$0xf] %v314
    %347 = vst [vmem:[#allocation7 + $0x1c] sm:$0xf] %v315
    %348 = vst [vmem:[#allocation7 + $0x20] sm:$0xf] %v316
    %349 = vst [vmem:[#allocation7 + $0x24] sm:$0xf] %v317
    %350 = vst [vmem:[#allocation7 + $0x28] sm:$0xf] %v318
    %351 = vst [vmem:[#allocation7 + $0x2c] sm:$0xf] %v319
    %352 = vst [vmem:[#allocation7 + $0x30] sm:$0xf] %v320
    %353 = vst [vmem:[#allocation7 + $0x34] sm:$0xf] %v321
    %354 = vst [vmem:[#allocation7 + $0x38] sm:$0xf] %v322
    %355 = vst [vmem:[#allocation7 + $0x3c] sm:$0xf] %v323
    // Predicated region
    $region22: #{tpu_custom_call.1} parent=1 // pred_check
      _
    $region23: #{tpu_custom_call.1} parent=1 // pred_check_branch
      %357 = sbr.rel (0) target = $region25
    $region24: #{tpu_custom_call.1} parent=1 // pred_region
      %s359 = ssub.s32 1024, 1024
      %360 = vsyncadd [#allocation4], %s359
      %s361 = sshll.u32 [#allocation7], 4
      %s362 = int_to_ptr.vmem [resolvable:$true] %s361
      %367 = dma.vmem_to_hbm [thread:$0]  %s362, 1024, %s3, [#allocation4], 64, 64, 4
    $region25: #{tpu_custom_call.1} parent=1 // pred_fallthru
      _
    // Predicated region
    $region26: #{tpu_custom_call.1} parent=1 // pred_check
      _
    $region27: #{tpu_custom_call.1} parent=1 // pred_check_branch
      %369 = sbr.rel (0) target = $region29
    $region28: #{tpu_custom_call.1} parent=1 // pred_region
      %370 = dma.done [#allocation4], 1024
    $region29: #{tpu_custom_call.1} parent=1 // pred_fallthru
      _
    %371 = vsyncpa [#allocation3], 1
    %372 = vsyncpa [#allocation6], 1
    %373 = vsyncpa [#allocation4], 1

</llo_original>
